<compile_context>
chip_gen: v5e
topology: v5e:2x2
jax: 0.10.0
libtpu: 0.0.40
codegen_flags: <defaults>
</compile_context>

<pallas_src>
import functools

import jax
import jax.numpy as jnp
from jax.experimental import pallas as pl
from jax.experimental.pallas import tpu as pltpu


def _round_up(x, m):
    return ((x + m - 1) // m) * m


# ---------------------------------------------------------------------------
# Preamble kernel: encoder -> mu/logvar -> reparameterize -> decoder layers 1-2
# Runs once per batch tile; everything is tiny, so it stays in f32 for accuracy.
# ---------------------------------------------------------------------------
def encoder_kernel(
    xcat_ref, eps_ref, dec1b_ref,            # per-batch-tile activations
    wenc1_ref, benc1_ref, we2_ref, be2_ref,  # resident encoder weights (folded)
    wmulv_ref, bmulv_ref,                    # fused mu|logvar head
    wd1z_ref, wd2_ref, bd2_ref,              # resident decoder weights 1-2
    d2_ref, mulv_ref,                        # outputs
):
    E = eps_ref.shape[1]
    dot = functools.partial(jnp.dot, preferred_element_type=jnp.float32)

    # encoder layer 1 on pre-concatenated [user_emb | genre | director]
    # (genre/director embedding linears folded into wenc1 offline)
    h = jnp.maximum(dot(xcat_ref[...], wenc1_ref[...]) + benc1_ref[...], 0.0)
    h = jnp.maximum(dot(h, we2_ref[...]) + be2_ref[...], 0.0)

    # fused mu/logvar head -> lane-dense [TB, 2E] slab
    mulv = dot(h, wmulv_ref[...]) + bmulv_ref[...]
    mulv_ref[...] = mulv
    mu = mulv[:, :E]
    logvar = mulv[:, E:]

    # reparameterize: z = mu + eps * exp(0.5 * logvar)
    z = mu + eps_ref[...] * jnp.exp(0.5 * logvar)

    # decoder layers 1-2; the (genre|director) contribution + bias of layer 1
    # is precomputed in the wrapper (dec1b).
    d1 = jnp.maximum(dot(z, wd1z_ref[...]) + dec1b_ref[...], 0.0)
    d2 = jnp.maximum(dot(d1, wd2_ref[...]) + bd2_ref[...], 0.0)
    d2_ref[...] = d2.astype(d2_ref.dtype)


# ---------------------------------------------------------------------------
# Main kernel: decoder output layer + sigmoid, tiled over (item, batch).
# ---------------------------------------------------------------------------
def decoder_out_kernel(d2_ref, wd3_ref, bd3_ref, out_ref):
    logits = jnp.dot(d2_ref[...], wd3_ref[...],
                     preferred_element_type=jnp.float32) + bd3_ref[...]
    # Numerically stable sigmoid: exp on the EUP, approx reciprocal on the EUP,
    # one VPU select.  exp(-|x|) <= 1 so nothing overflows.
    e = jnp.exp(-jnp.abs(logits))
    r = pl.reciprocal(1.0 + e, approx=True)
    out_ref[...] = jnp.where(logits >= 0.0, r, 1.0 - r).astype(out_ref.dtype)


def recvae_forward(user, genre, director, eps, params, *,
                   batch_tile=256, item_tile=8192):
    """user: int32 [B]; genre/director/eps: float [B, *]; params: dict of f32.

    Returns (output[bf16, B x num_items], mu[f32], logvar[f32]).
    """
    f32, bf16 = jnp.float32, jnp.bfloat16

    # nn.Embedding lookup (gather) stays in plain-JAX glue.
    user_emb = jnp.take(params["user_embedding"], user, axis=0).astype(f32)  # [B, E]
    B, E = user_emb.shape
    H = params["we2"].shape[0]
    G_in = params["wg"].shape[0]          # num_genres
    D_in = params["wd"].shape[0]          # num_directors
    Gd = params["wg"].shape[1]            # genre_dim
    num_items = params["wdec3"].shape[1]

    # ---- offline weight prep: fold the (purely linear) genre/director
    # embeddings into the first encoder/decoder layers; fuse mu/logvar heads.
    wg, bg = params["wg"], params["bg"]
    wd, bd = params["wd"], params["bd"]
    we1, be1 = params["we1"], params["be1"]
    wdec1, bdec1 = params["wdec1"], params["bdec1"]

    we1_gp, we1_dp = we1[E:E + Gd], we1[E + Gd:]
    wenc1 = jnp.concatenate([we1[:E], wg @ we1_gp, wd @ we1_dp], axis=0)  # [E+G+D, H]
    be1_f = be1 + bg @ we1_gp + bd @ we1_dp

    wd1_gp, wd1_dp = wdec1[E:E + Gd], wdec1[E + Gd:]
    wd1_z = wdec1[:E]                                                     # [E, H]
    wd1_gd = jnp.concatenate([wg @ wd1_gp, wd @ wd1_dp], axis=0)          # [G+D, H]
    bd1_f = bdec1 + bg @ wd1_gp + bd @ wd1_dp

    wmulv = jnp.concatenate([params["wmu"], params["wlv"]], axis=1)   # [H, 2E]
    bmulv = jnp.concatenate([params["bmu"], params["blv"]], axis=1)   # [1, 2E]

    # ---- tiling / padding (batch rounded to 16 for bf16-friendly sublanes) --
    TB = min(batch_tile, _round_up(B, 16))
    TN = min(item_tile, _round_up(num_items, 128))
    B_pad = _round_up(B, TB)
    N_pad = _round_up(num_items, TN)

    def pad_b(x):
        return jnp.pad(x, ((0, B_pad - B), (0, 0))) if B_pad != B else x

    genre_f = genre.astype(f32)
    director_f = director.astype(f32)
    xcat = jnp.concatenate([user_emb, genre_f, director_f], axis=1)       # [B, E+G+D]
    gd = jnp.concatenate([genre_f, director_f], axis=1)                   # [B, G+D]
    dec1_base = gd @ wd1_gd + bd1_f                                       # [B, H]

    xcat_b = pad_b(xcat)
    eps_b = pad_b(eps.astype(f32))
    dec1b_b = pad_b(dec1_base)

    wd3 = params["wdec3"].astype(bf16)
    bd3 = params["bdec3"].astype(f32)
    if N_pad != num_items:
        wd3 = jnp.pad(wd3, ((0, 0), (0, N_pad - num_items)))
        bd3 = jnp.pad(bd3, ((0, 0), (0, N_pad - num_items)))

    # -------------------- preamble: encoder / reparam / dec1-2 --------------
    def stream_b(shape):                 # per-batch-tile activation
        return pl.BlockSpec(shape, lambda b: (b, 0))

    def resident(shape):                 # small weight, DMA'd once
        return pl.BlockSpec(shape, lambda b: (0, 0))

    d2, mulv = pl.pallas_call(
        encoder_kernel,
        grid=(B_pad // TB,),
        in_specs=[
            stream_b((TB, E + G_in + D_in)),   # xcat
            stream_b((TB, E)),                 # eps
            stream_b((TB, H)),                 # dec1 base (gd part + bias)
            resident((E + G_in + D_in, H)), resident((1, H)),
            resident((H, H)), resident((1, H)),
            resident((H, 2 * E)), resident((1, 2 * E)),
            resident((E, H)),
            resident((H, H)), resident((1, H)),
        ],
        out_specs=(
            pl.BlockSpec((TB, H), lambda b: (b, 0)),
            pl.BlockSpec((TB, 2 * E), lambda b: (b, 0)),
        ),
        out_shape=(
            jax.ShapeDtypeStruct((B_pad, H), bf16),
            jax.ShapeDtypeStruct((B_pad, 2 * E), f32),
        ),
        compiler_params=pltpu.CompilerParams(
            dimension_semantics=("parallel",),
        ),
    )(
        xcat_b, eps_b, dec1b_b,
        wenc1.astype(f32), be1_f.astype(f32),
        params["we2"].astype(f32), params["be2"].astype(f32),
        wmulv.astype(f32), bmulv.astype(f32),
        wd1_z.astype(f32),
        params["wdec2"].astype(f32), params["bdec2"].astype(f32),
    )

    # -------------------- main: decoder output layer + sigmoid --------------
    # grid = (item_tiles, batch_tiles): batch is the inner axis, so wd3's block
    # index is constant across it and the decoder matrix is read from HBM once.
    cost = pl.CostEstimate(
        flops=2 * B_pad * H * N_pad,
        transcendentals=B_pad * N_pad,
        bytes_accessed=(H * N_pad * 2) + (B_pad * N_pad * 2)
                       + (B_pad * H * 2) + (N_pad * 4),
    )

    out_pad = pl.pallas_call(
        decoder_out_kernel,
        grid=(N_pad // TN, B_pad // TB),
        in_specs=[
            pl.BlockSpec((TB, H), lambda n, b: (b, 0)),    # d2 (bf16, tiny)
            pl.BlockSpec((H, TN), lambda n, b: (0, n)),    # wd3 tile, VMEM-resident over b
            pl.BlockSpec((1, TN), lambda n, b: (0, n)),    # bd3 tile
        ],
        out_specs=pl.BlockSpec((TB, TN), lambda n, b: (b, n)),
        out_shape=jax.ShapeDtypeStruct((B_pad, N_pad), bf16),   # bf16 store: HBM-bound
        compiler_params=pltpu.CompilerParams(
            # no cross-iteration state -> both axes parallel; v7x megacore can
            # shard the item axis even for a single batch tile.
            dimension_semantics=("parallel", "parallel"),
            vmem_limit_bytes=48 * 1024 * 1024,
        ),
        cost_estimate=cost,
    )(d2, wd3, bd3)

    output = out_pad[:B, :num_items]
    mu = mulv[:B, :E]
    logvar = mulv[:B, E:]
    return output, mu, logvar


# ---------------------------------------------------------------------------
# pure-JAX f32 reference (mirrors the PyTorch forward) for correctness checks
# ---------------------------------------------------------------------------
def recvae_reference(user, genre, director, eps, params):
    user_emb = jnp.take(params["user_embedding"], user, axis=0)
    genre_emb = genre @ params["wg"] + params["bg"]
    dir_emb = director @ params["wd"] + params["bd"]
    enc_in = jnp.concatenate([user_emb, genre_emb, dir_emb], axis=1)
    h = jax.nn.relu(enc_in @ params["we1"] + params["be1"])
    h = jax.nn.relu(h @ params["we2"] + params["be2"])
    mu = h @ params["wmu"] + params["bmu"]
    logvar = h @ params["wlv"] + params["blv"]
    z = mu + eps * jnp.exp(0.5 * logvar)
    dec_in = jnp.concatenate([z, genre_emb, dir_emb], axis=1)
    d = jax.nn.relu(dec_in @ params["wdec1"] + params["bdec1"])
    d = jax.nn.relu(d @ params["wdec2"] + params["bdec2"])
    out = jax.nn.sigmoid(d @ params["wdec3"] + params["bdec3"])
    return out, mu, logvar


def _init_linear(key, fan_in, fan_out):
    """PyTorch nn.Linear-style init; returns (W_transposed [in,out], b [1,out])."""
    kw, kb = jax.random.split(key)
    bound = 1.0 / jnp.sqrt(float(fan_in))
    w = jax.random.uniform(kw, (fan_out, fan_in), jnp.float32, -bound, bound)
    b = jax.random.uniform(kb, (fan_out,), jnp.float32, -bound, bound)
    return w.T, b.reshape(1, fan_out)


def init_params(key, num_users, num_items, num_genres, num_directors,
                embedding_dim=64, hidden_dim=128, genre_dim=64, director_dim=64):
    keys = jax.random.split(key, 10)
    enc_in = embedding_dim + genre_dim + director_dim
    p = {}
    p["user_embedding"] = jax.random.normal(keys[0], (num_users, embedding_dim), jnp.float32)
    p["wg"], p["bg"] = _init_linear(keys[1], num_genres, genre_dim)
    p["wd"], p["bd"] = _init_linear(keys[2], num_directors, director_dim)
    p["we1"], p["be1"] = _init_linear(keys[3], enc_in, hidden_dim)
    p["we2"], p["be2"] = _init_linear(keys[4], hidden_dim, hidden_dim)
    p["wmu"], p["bmu"] = _init_linear(keys[5], hidden_dim, embedding_dim)
    p["wlv"], p["blv"] = _init_linear(keys[6], hidden_dim, embedding_dim)
    p["wdec1"], p["bdec1"] = _init_linear(keys[7], enc_in, hidden_dim)
    p["wdec2"], p["bdec2"] = _init_linear(keys[8], hidden_dim, hidden_dim)
    p["wdec3"], p["bdec3"] = _init_linear(keys[9], hidden_dim, num_items)
    return p


if __name__ == "__main__":
    key = jax.random.PRNGKey(0)
    B = 8
    num_users, num_items = 16, 256
    num_genres, num_directors = 8, 12
    embedding_dim, hidden_dim = 64, 128

    kp, ku, ki, kg, kd, ke = jax.random.split(key, 6)
    params = init_params(kp, num_users, num_items, num_genres, num_directors,
                         embedding_dim=embedding_dim, hidden_dim=hidden_dim)

    user = jax.random.randint(ku, (B,), 0, num_users, dtype=jnp.int32)
    # item_vector is an argument of RecVAE.forward but is unused in its body.
    item_vector = (jax.random.uniform(ki, (B, num_items)) > 0.5).astype(jnp.float32)
    genre = (jax.random.uniform(kg, (B, num_genres)) > 0.5).astype(jnp.float32)
    director = (jax.random.uniform(kd, (B, num_directors)) > 0.5).astype(jnp.float32)
    # deterministic stand-in for torch.randn_like(std) in reparameterize()
    eps = jax.random.normal(ke, (B, embedding_dim), jnp.float32)

    output, mu, logvar = jax.jit(recvae_forward)(user, genre, director, eps, params)
    jax.block_until_ready((output, mu, logvar))

    ref_out, ref_mu, ref_lv = recvae_reference(user, genre, director, eps, params)

    assert output.shape == (B, num_items)
    assert mu.shape == (B, embedding_dim) and logvar.shape == (B, embedding_dim)
    out_f32 = output.astype(jnp.float32)
    assert bool(jnp.all(jnp.isfinite(out_f32)))
    # bf16 decoder matmul + bf16 output store + approx-reciprocal sigmoid
    # -> loose tolerance vs the f32 reference.
    assert float(jnp.max(jnp.abs(out_f32 - ref_out))) < 5e-2
    assert float(jnp.max(jnp.abs(mu - ref_mu))) < 5e-2
    assert float(jnp.max(jnp.abs(logvar - ref_lv))) < 5e-2
    print("KERNEL_OK")
</pallas_src>

<mosaic_0001>
module attributes {stable_mosaic.version = 11 : i64} {
  func.func @encoder_kernel(%arg0: i32, %arg1: memref<16x84xf32, #tpu.memory_space<vmem>>, %arg2: memref<16x64xf32, #tpu.memory_space<vmem>>, %arg3: memref<16x128xf32, #tpu.memory_space<vmem>>, %arg4: memref<84x128xf32, #tpu.memory_space<vmem>>, %arg5: memref<1x128xf32, #tpu.memory_space<vmem>>, %arg6: memref<128x128xf32, #tpu.memory_space<vmem>>, %arg7: memref<1x128xf32, #tpu.memory_space<vmem>>, %arg8: memref<128x128xf32, #tpu.memory_space<vmem>>, %arg9: memref<1x128xf32, #tpu.memory_space<vmem>>, %arg10: memref<64x128xf32, #tpu.memory_space<vmem>>, %arg11: memref<128x128xf32, #tpu.memory_space<vmem>>, %arg12: memref<1x128xf32, #tpu.memory_space<vmem>>, %arg13: memref<16x128xbf16, #tpu.memory_space<vmem>>, %arg14: memref<16x128xf32, #tpu.memory_space<vmem>>) attributes {dimension_semantics = [#tpu.dimension_semantics<parallel>], iteration_bounds = array<i64: 1>, scalar_prefetch = 0 : i64, scratch_operands = 0 : i64, tpu.core_type = #tpu.core_type<tc>, window_params = [{transform_indices = @transform_0, window_bounds = array<i64: 16, 84>}, {transform_indices = @transform_1, window_bounds = array<i64: 16, 64>}, {transform_indices = @transform_2, window_bounds = array<i64: 16, 128>}, {pipeline_mode = #tpu.pipeline_mode<synchronous>, transform_indices = @transform_3, window_bounds = array<i64: 84, 128>}, {pipeline_mode = #tpu.pipeline_mode<synchronous>, transform_indices = @transform_4, window_bounds = array<i64: 1, 128>}, {pipeline_mode = #tpu.pipeline_mode<synchronous>, transform_indices = @transform_5, window_bounds = array<i64: 128, 128>}, {pipeline_mode = #tpu.pipeline_mode<synchronous>, transform_indices = @transform_6, window_bounds = array<i64: 1, 128>}, {pipeline_mode = #tpu.pipeline_mode<synchronous>, transform_indices = @transform_7, window_bounds = array<i64: 128, 128>}, {pipeline_mode = #tpu.pipeline_mode<synchronous>, transform_indices = @transform_8, window_bounds = array<i64: 1, 128>}, {pipeline_mode = #tpu.pipeline_mode<synchronous>, transform_indices = @transform_9, window_bounds = array<i64: 64, 128>}, {pipeline_mode = #tpu.pipeline_mode<synchronous>, transform_indices = @transform_10, window_bounds = array<i64: 128, 128>}, {pipeline_mode = #tpu.pipeline_mode<synchronous>, transform_indices = @transform_11, window_bounds = array<i64: 1, 128>}, {transform_indices = @transform_12, window_bounds = array<i64: 16, 128>}, {transform_indices = @transform_13, window_bounds = array<i64: 16, 128>}]} {
    %c0 = arith.constant 0 : index
    %c0_0 = arith.constant 0 : index
    %0 = vector.load %arg1[%c0, %c0_0] : memref<16x84xf32, #tpu.memory_space<vmem>>, vector<16x84xf32>
    %c0_1 = arith.constant 0 : index
    %c0_2 = arith.constant 0 : index
    %1 = vector.load %arg4[%c0_1, %c0_2] : memref<84x128xf32, #tpu.memory_space<vmem>>, vector<84x128xf32>
    %cst = arith.constant dense<0.000000e+00> : vector<16x128xf32>
    %2 = tpu.matmul %0, %1, %cst {dimension_numbers = #tpu.dot_dimension_numbers<[1], [0], [0], [1], [0, 0, 1, 1], [], []>} : vector<16x84xf32>, vector<84x128xf32>, vector<16x128xf32> -> vector<16x128xf32>
    %c0_3 = arith.constant 0 : index
    %c0_4 = arith.constant 0 : index
    %3 = vector.load %arg5[%c0_3, %c0_4] : memref<1x128xf32, #tpu.memory_space<vmem>>, vector<1x128xf32>
    %4 = vector.broadcast %3 : vector<1x128xf32> to vector<16x128xf32>
    %5 = arith.addf %2, %4 : vector<16x128xf32>
    %cst_5 = arith.constant 0.000000e+00 : f32
    %6 = vector.broadcast %cst_5 : f32 to vector<16x128xf32>
    %7 = arith.maximumf %5, %6 : vector<16x128xf32>
    %c0_6 = arith.constant 0 : index
    %c0_7 = arith.constant 0 : index
    %8 = vector.load %arg6[%c0_6, %c0_7] : memref<128x128xf32, #tpu.memory_space<vmem>>, vector<128x128xf32>
    %cst_8 = arith.constant dense<0.000000e+00> : vector<16x128xf32>
    %9 = tpu.matmul %7, %8, %cst_8 {dimension_numbers = #tpu.dot_dimension_numbers<[1], [0], [0], [1], [0, 0, 1, 1], [], []>} : vector<16x128xf32>, vector<128x128xf32>, vector<16x128xf32> -> vector<16x128xf32>
    %c0_9 = arith.constant 0 : index
    %c0_10 = arith.constant 0 : index
    %10 = vector.load %arg7[%c0_9, %c0_10] : memref<1x128xf32, #tpu.memory_space<vmem>>, vector<1x128xf32>
    %11 = vector.broadcast %10 : vector<1x128xf32> to vector<16x128xf32>
    %12 = arith.addf %9, %11 : vector<16x128xf32>
    %cst_11 = arith.constant 0.000000e+00 : f32
    %13 = vector.broadcast %cst_11 : f32 to vector<16x128xf32>
    %14 = arith.maximumf %12, %13 : vector<16x128xf32>
    %c0_12 = arith.constant 0 : index
    %c0_13 = arith.constant 0 : index
    %15 = vector.load %arg8[%c0_12, %c0_13] : memref<128x128xf32, #tpu.memory_space<vmem>>, vector<128x128xf32>
    %cst_14 = arith.constant dense<0.000000e+00> : vector<16x128xf32>
    %16 = tpu.matmul %14, %15, %cst_14 {dimension_numbers = #tpu.dot_dimension_numbers<[1], [0], [0], [1], [0, 0, 1, 1], [], []>} : vector<16x128xf32>, vector<128x128xf32>, vector<16x128xf32> -> vector<16x128xf32>
    %c0_15 = arith.constant 0 : index
    %c0_16 = arith.constant 0 : index
    %17 = vector.load %arg9[%c0_15, %c0_16] : memref<1x128xf32, #tpu.memory_space<vmem>>, vector<1x128xf32>
    %18 = vector.broadcast %17 : vector<1x128xf32> to vector<16x128xf32>
    %19 = arith.addf %16, %18 : vector<16x128xf32>
    %c0_17 = arith.constant 0 : index
    %c0_18 = arith.constant 0 : index
    %20 = vector.load %arg14[%c0_17, %c0_18] : memref<16x128xf32, #tpu.memory_space<vmem>>, vector<16x128xf32>
    tpu.vector_store %arg14[%c0_17, %c0_18], %19 {strides = array<i32>} : memref<16x128xf32, #tpu.memory_space<vmem>>, vector<16x128xf32>,
    %21 = vector.extract_strided_slice %19 {offsets = [0, 0], sizes = [16, 64], strides = [1, 1]} : vector<16x128xf32> to vector<16x64xf32>
    %22 = vector.extract_strided_slice %19 {offsets = [0, 64], sizes = [16, 64], strides = [1, 1]} : vector<16x128xf32> to vector<16x64xf32>
    %c0_19 = arith.constant 0 : index
    %c0_20 = arith.constant 0 : index
    %23 = vector.load %arg2[%c0_19, %c0_20] : memref<16x64xf32, #tpu.memory_space<vmem>>, vector<16x64xf32>
    %cst_21 = arith.constant 5.000000e-01 : f32
    %24 = vector.broadcast %cst_21 : f32 to vector<16x64xf32>
    %25 = arith.mulf %24, %22 : vector<16x64xf32>
    %26 = math.exp %25 : vector<16x64xf32>
    %27 = arith.mulf %23, %26 : vector<16x64xf32>
    %28 = arith.addf %21, %27 : vector<16x64xf32>
    %c0_22 = arith.constant 0 : index
    %c0_23 = arith.constant 0 : index
    %29 = vector.load %arg10[%c0_22, %c0_23] : memref<64x128xf32, #tpu.memory_space<vmem>>, vector<64x128xf32>
    %cst_24 = arith.constant dense<0.000000e+00> : vector<16x128xf32>
    %30 = tpu.matmul %28, %29, %cst_24 {dimension_numbers = #tpu.dot_dimension_numbers<[1], [0], [0], [1], [0, 0, 1, 1], [], []>} : vector<16x64xf32>, vector<64x128xf32>, vector<16x128xf32> -> vector<16x128xf32>
    %c0_25 = arith.constant 0 : index
    %c0_26 = arith.constant 0 : index
    %31 = vector.load %arg3[%c0_25, %c0_26] : memref<16x128xf32, #tpu.memory_space<vmem>>, vector<16x128xf32>
    %32 = arith.addf %30, %31 : vector<16x128xf32>
    %cst_27 = arith.constant 0.000000e+00 : f32
    %33 = vector.broadcast %cst_27 : f32 to vector<16x128xf32>
    %34 = arith.maximumf %32, %33 : vector<16x128xf32>
    %c0_28 = arith.constant 0 : index
    %c0_29 = arith.constant 0 : index
    %35 = vector.load %arg11[%c0_28, %c0_29] : memref<128x128xf32, #tpu.memory_space<vmem>>, vector<128x128xf32>
    %cst_30 = arith.constant dense<0.000000e+00> : vector<16x128xf32>
    %36 = tpu.matmul %34, %35, %cst_30 {dimension_numbers = #tpu.dot_dimension_numbers<[1], [0], [0], [1], [0, 0, 1, 1], [], []>} : vector<16x128xf32>, vector<128x128xf32>, vector<16x128xf32> -> vector<16x128xf32>
    %c0_31 = arith.constant 0 : index
    %c0_32 = arith.constant 0 : index
    %37 = vector.load %arg12[%c0_31, %c0_32] : memref<1x128xf32, #tpu.memory_space<vmem>>, vector<1x128xf32>
    %38 = vector.broadcast %37 : vector<1x128xf32> to vector<16x128xf32>
    %39 = arith.addf %36, %38 : vector<16x128xf32>
    %cst_33 = arith.constant 0.000000e+00 : f32
    %40 = vector.broadcast %cst_33 : f32 to vector<16x128xf32>
    %41 = arith.maximumf %39, %40 : vector<16x128xf32>
    %42 = arith.truncf %41 : vector<16x128xf32> to vector<16x128xbf16>
    %c0_34 = arith.constant 0 : index
    %c0_35 = arith.constant 0 : index
    %43 = vector.load %arg13[%c0_34, %c0_35] : memref<16x128xbf16, #tpu.memory_space<vmem>>, vector<16x128xbf16>
    tpu.vector_store %arg13[%c0_34, %c0_35], %42 {strides = array<i32>} : memref<16x128xbf16, #tpu.memory_space<vmem>>, vector<16x128xbf16>,
    return
  }
  func.func @transform_0(%arg0: i32) -> (i32, i32) {
    %c0_i32 = arith.constant 0 : i32
    %c0_i32_0 = arith.constant 0 : i32
    return %arg0, %c0_i32 : i32, i32
  }
  func.func @transform_1(%arg0: i32) -> (i32, i32) {
    %c0_i32 = arith.constant 0 : i32
    %c0_i32_0 = arith.constant 0 : i32
    return %arg0, %c0_i32 : i32, i32
  }
  func.func @transform_2(%arg0: i32) -> (i32, i32) {
    %c0_i32 = arith.constant 0 : i32
    %c0_i32_0 = arith.constant 0 : i32
    return %arg0, %c0_i32 : i32, i32
  }
  func.func @transform_3(%arg0: i32) -> (i32, i32) {
    %c0_i32 = arith.constant 0 : i32
    %c0_i32_0 = arith.constant 0 : i32
    %c0_i32_1 = arith.constant 0 : i32
    return %c0_i32, %c0_i32_0 : i32, i32
  }
  func.func @transform_4(%arg0: i32) -> (i32, i32) {
    %c0_i32 = arith.constant 0 : i32
    %c0_i32_0 = arith.constant 0 : i32
    %c0_i32_1 = arith.constant 0 : i32
    return %c0_i32, %c0_i32_0 : i32, i32
  }
  func.func @transform_5(%arg0: i32) -> (i32, i32) {
    %c0_i32 = arith.constant 0 : i32
    %c0_i32_0 = arith.constant 0 : i32
    %c0_i32_1 = arith.constant 0 : i32
    return %c0_i32, %c0_i32_0 : i32, i32
  }
  func.func @transform_6(%arg0: i32) -> (i32, i32) {
    %c0_i32 = arith.constant 0 : i32
    %c0_i32_0 = arith.constant 0 : i32
    %c0_i32_1 = arith.constant 0 : i32
    return %c0_i32, %c0_i32_0 : i32, i32
  }
  func.func @transform_7(%arg0: i32) -> (i32, i32) {
    %c0_i32 = arith.constant 0 : i32
    %c0_i32_0 = arith.constant 0 : i32
    %c0_i32_1 = arith.constant 0 : i32
    return %c0_i32, %c0_i32_0 : i32, i32
  }
  func.func @transform_8(%arg0: i32) -> (i32, i32) {
    %c0_i32 = arith.constant 0 : i32
    %c0_i32_0 = arith.constant 0 : i32
    %c0_i32_1 = arith.constant 0 : i32
    return %c0_i32, %c0_i32_0 : i32, i32
  }
  func.func @transform_9(%arg0: i32) -> (i32, i32) {
    %c0_i32 = arith.constant 0 : i32
    %c0_i32_0 = arith.constant 0 : i32
    %c0_i32_1 = arith.constant 0 : i32
    return %c0_i32, %c0_i32_0 : i32, i32
  }
  func.func @transform_10(%arg0: i32) -> (i32, i32) {
    %c0_i32 = arith.constant 0 : i32
    %c0_i32_0 = arith.constant 0 : i32
    %c0_i32_1 = arith.constant 0 : i32
    return %c0_i32, %c0_i32_0 : i32, i32
  }
  func.func @transform_11(%arg0: i32) -> (i32, i32) {
    %c0_i32 = arith.constant 0 : i32
    %c0_i32_0 = arith.constant 0 : i32
    %c0_i32_1 = arith.constant 0 : i32
    return %c0_i32, %c0_i32_0 : i32, i32
  }
  func.func @transform_12(%arg0: i32) -> (i32, i32) {
    %c0_i32 = arith.constant 0 : i32
    %c0_i32_0 = arith.constant 0 : i32
    return %arg0, %c0_i32 : i32, i32
  }
  func.func @transform_13(%arg0: i32) -> (i32, i32) {
    %c0_i32 = arith.constant 0 : i32
    %c0_i32_0 = arith.constant 0 : i32
    return %arg0, %c0_i32 : i32, i32
  }
}

module attributes {stable_mosaic.version = 11 : i64} {
  func.func @decoder_out_kernel(%arg0: i32, %arg1: i32, %arg2: memref<16x128xbf16, #tpu.memory_space<vmem>>, %arg3: memref<128x256xbf16, #tpu.memory_space<vmem>>, %arg4: memref<1x256xf32, #tpu.memory_space<vmem>>, %arg5: memref<16x256xbf16, #tpu.memory_space<vmem>>) attributes {dimension_semantics = [#tpu.dimension_semantics<parallel>, #tpu.dimension_semantics<parallel>], iteration_bounds = array<i64: 1, 1>, scalar_prefetch = 0 : i64, scratch_operands = 0 : i64, tpu.core_type = #tpu.core_type<tc>, window_params = [{transform_indices = @transform_0, window_bounds = array<i64: 16, 128>}, {transform_indices = @transform_1, window_bounds = array<i64: 128, 256>}, {transform_indices = @transform_2, window_bounds = array<i64: 1, 256>}, {transform_indices = @transform_3, window_bounds = array<i64: 16, 256>}]} {
    %c0 = arith.constant 0 : index
    %c0_0 = arith.constant 0 : index
    %0 = vector.load %arg2[%c0, %c0_0] : memref<16x128xbf16, #tpu.memory_space<vmem>>, vector<16x128xbf16>
    %c0_1 = arith.constant 0 : index
    %c0_2 = arith.constant 0 : index
    %1 = vector.load %arg3[%c0_1, %c0_2] : memref<128x256xbf16, #tpu.memory_space<vmem>>, vector<128x256xbf16>
    %cst = arith.constant dense<0.000000e+00> : vector<16x256xf32>
    %2 = tpu.matmul %0, %1, %cst {dimension_numbers = #tpu.dot_dimension_numbers<[1], [0], [0], [1], [0, 0, 1, 1], [], []>} : vector<16x128xbf16>, vector<128x256xbf16>, vector<16x256xf32> -> vector<16x256xf32>
    %c0_3 = arith.constant 0 : index
    %c0_4 = arith.constant 0 : index
    %3 = vector.load %arg4[%c0_3, %c0_4] : memref<1x256xf32, #tpu.memory_space<vmem>>, vector<1x256xf32>
    %4 = vector.broadcast %3 : vector<1x256xf32> to vector<16x256xf32>
    %5 = arith.addf %2, %4 : vector<16x256xf32>
    %6 = math.absf %5 : vector<16x256xf32>
    %cst_5 = arith.constant 0.000000e+00 : f32
    %7 = vector.broadcast %cst_5 : f32 to vector<16x256xf32>
    %8 = arith.subf %7, %6 : vector<16x256xf32>
    %9 = math.exp %8 : vector<16x256xf32>
    %cst_6 = arith.constant 1.000000e+00 : f32
    %10 = vector.broadcast %cst_6 : f32 to vector<16x256xf32>
    %11 = arith.addf %10, %9 : vector<16x256xf32>
    %12 = tpu.reciprocal %11 {approx = true} : vector<16x256xf32> -> vector<16x256xf32>
    %cst_7 = arith.constant 0.000000e+00 : f32
    %13 = vector.broadcast %cst_7 : f32 to vector<16x256xf32>
    %14 = arith.cmpf oge, %5, %13 : vector<16x256xf32>
    %cst_8 = arith.constant 1.000000e+00 : f32
    %15 = vector.broadcast %cst_8 : f32 to vector<16x256xf32>
    %16 = arith.subf %15, %12 : vector<16x256xf32>
    %17 = arith.select %14, %12, %16 : vector<16x256xi1>, vector<16x256xf32>
    %18 = arith.truncf %17 : vector<16x256xf32> to vector<16x256xbf16>
    %c0_9 = arith.constant 0 : index
    %c0_10 = arith.constant 0 : index
    %19 = vector.load %arg5[%c0_9, %c0_10] : memref<16x256xbf16, #tpu.memory_space<vmem>>, vector<16x256xbf16>
    tpu.vector_store %arg5[%c0_9, %c0_10], %18 {strides = array<i32>} : memref<16x256xbf16, #tpu.memory_space<vmem>>, vector<16x256xbf16>,
    return
  }
  func.func @transform_0(%arg0: i32, %arg1: i32) -> (i32, i32) {
    %c0_i32 = arith.constant 0 : i32
    %c0_i32_0 = arith.constant 0 : i32
    return %arg1, %c0_i32 : i32, i32
  }
  func.func @transform_1(%arg0: i32, %arg1: i32) -> (i32, i32) {
    %c0_i32 = arith.constant 0 : i32
    %c0_i32_0 = arith.constant 0 : i32
    return %c0_i32, %arg0 : i32, i32
  }
  func.func @transform_2(%arg0: i32, %arg1: i32) -> (i32, i32) {
    %c0_i32 = arith.constant 0 : i32
    %c0_i32_0 = arith.constant 0 : i32
    return %c0_i32, %arg0 : i32, i32
  }
  func.func @transform_3(%arg0: i32, %arg1: i32) -> (i32, i32) {
    %c0_i32 = arith.constant 0 : i32
    return %arg1, %arg0 : i32, i32
  }
}

</mosaic_0001>

<llo_original>
// kernel: recvae_forward.3
$region0: #{recvae_forward.3}
  #allocation0 [shape = 'u32[]', space=smem, size = 0x4, offset = 0x4, fixed_abs, tag = 'smem constant byte address 0x4 - core index']
  #allocation1 [shape = 'u32[72,128]{1,0:T(1,128)}', space=vmem, size = 0x9000, scoped, tag = 'internal scratch']
  %s0 = inlined_call_operand.vmem [shape: bf16[16,128], index: 0, kind: input, shape index: {}]
  %s1 = inlined_call_operand.vmem [shape: bf16[128,256], index: 1, kind: input, shape index: {}]
  %s2 = inlined_call_operand.vmem [shape: f32[1,256], index: 2, kind: input, shape index: {}]
  %s3 = inlined_call_operand.vmem [shape: bf16[16,256], index: 3, kind: output, shape index: {}]
  %s4 = sld [smem:[#allocation0]]
  $region22: #{recvae_forward.3} parent=0
    _
  %s6 = ssub.s32 1, %s4
  %s7 = scalar_select 0, %s6, %s4
  // Predicated region
  $region2: #{recvae_forward.3} parent=0 // pred_check
    _
  $region3: #{recvae_forward.3} parent=0 // pred_check_branch
    %9 = sbr.rel (0) target = $region5
  $region4: #{recvae_forward.3} parent=0 // pred_region
    _
  $region5: #{recvae_forward.3} parent=0 // pred_fallthru
    _
  // Predicated region
  $region6: #{recvae_forward.3} parent=0 // pred_check
    _
  $region7: #{recvae_forward.3} parent=0 // pred_check_branch
    %11 = sbr.rel (0) target = $region9
  $region8: #{recvae_forward.3} parent=0 // pred_region
    _
  $region9: #{recvae_forward.3} parent=0 // pred_fallthru
    _
  // Predicated region
  $region10: #{recvae_forward.3} parent=0 // pred_check
    _
  $region11: #{recvae_forward.3} parent=0 // pred_check_branch
    %13 = sbr.rel (0) target = $region13
  $region12: #{recvae_forward.3} parent=0 // pred_region
    _
  $region13: #{recvae_forward.3} parent=0 // pred_fallthru
    _
  %v14 = vld [vmem:[%s0] sm:$0xf]
  %v15 = vld [vmem:[%s0 + $0x4] sm:$0xf]
  %v16 = vld [vmem:[%s1] sm:$0xff]
  %v17 = vld [vmem:[%s1 + $0x8] sm:$0xff]
  %v18 = vld [vmem:[%s1 + $0x10] sm:$0xff]
  %v19 = vld [vmem:[%s1 + $0x18] sm:$0xff]
  %v20 = vld [vmem:[%s1 + $0x20] sm:$0xff]
  %v21 = vld [vmem:[%s1 + $0x28] sm:$0xff]
  %v22 = vld [vmem:[%s1 + $0x30] sm:$0xff]
  %v23 = vld [vmem:[%s1 + $0x38] sm:$0xff]
  %v24 = vld [vmem:[%s1 + $0x40] sm:$0xff]
  %v25 = vld [vmem:[%s1 + $0x48] sm:$0xff]
  %v26 = vld [vmem:[%s1 + $0x50] sm:$0xff]
  %v27 = vld [vmem:[%s1 + $0x58] sm:$0xff]
  %v28 = vld [vmem:[%s1 + $0x60] sm:$0xff]
  %v29 = vld [vmem:[%s1 + $0x68] sm:$0xff]
  %v30 = vld [vmem:[%s1 + $0x70] sm:$0xff]
  %v31 = vld [vmem:[%s1 + $0x78] sm:$0xff]
  %v32 = vld [vmem:[%s2] sm:$0x3]
  %v34 = vperm.slane %v32, 0
  %v35 = vperm.slane %v32, 1
  %v40 = vunpack.c.l.b16 %v14
  %v41 = vunpack.c.l.b16 %v15
  %v42 = vpack.c.b16 %v41, %v40
  %v60 = vunpack.c.l.b16 %v16
  %v61 = vunpack.c.h.b16 %v16
  %v62 = vunpack.c.l.b16 %v17
  %v63 = vunpack.c.h.b16 %v17
  %v64 = vunpack.c.l.b16 %v18
  %v65 = vunpack.c.h.b16 %v18
  %v66 = vunpack.c.l.b16 %v19
  %v67 = vunpack.c.h.b16 %v19
  %v68 = vunpack.c.l.b16 %v20
  %v69 = vunpack.c.h.b16 %v20
  %v70 = vunpack.c.l.b16 %v21
  %v71 = vunpack.c.h.b16 %v21
  %v72 = vunpack.c.l.b16 %v22
  %v73 = vunpack.c.h.b16 %v22
  %v74 = vunpack.c.l.b16 %v23
  %v75 = vunpack.c.h.b16 %v23
  %v76 = vunpack.c.l.b16 %v24
  %v77 = vunpack.c.h.b16 %v24
  %v78 = vunpack.c.l.b16 %v25
  %v79 = vunpack.c.h.b16 %v25
  %v80 = vunpack.c.l.b16 %v26
  %v81 = vunpack.c.h.b16 %v26
  %v82 = vunpack.c.l.b16 %v27
  %v83 = vunpack.c.h.b16 %v27
  %v84 = vunpack.c.l.b16 %v28
  %v85 = vunpack.c.h.b16 %v28
  %v86 = vunpack.c.l.b16 %v29
  %v87 = vunpack.c.h.b16 %v29
  %v88 = vunpack.c.l.b16 %v30
  %v89 = vunpack.c.h.b16 %v30
  %v90 = vunpack.c.l.b16 %v31
  %v91 = vunpack.c.h.b16 %v31
  %v92 = vpack.c.b16 %v62, %v60
  %v93 = vpack.c.b16 %v63, %v61
  %v94 = vpack.c.b16 %v66, %v64
  %v95 = vpack.c.b16 %v67, %v65
  %v96 = vpack.c.b16 %v70, %v68
  %v97 = vpack.c.b16 %v71, %v69
  %v98 = vpack.c.b16 %v74, %v72
  %v99 = vpack.c.b16 %v75, %v73
  %v100 = vpack.c.b16 %v78, %v76
  %v101 = vpack.c.b16 %v79, %v77
  %v102 = vpack.c.b16 %v82, %v80
  %v103 = vpack.c.b16 %v83, %v81
  %v104 = vpack.c.b16 %v86, %v84
  %v105 = vpack.c.b16 %v87, %v85
  %v106 = vpack.c.b16 %v90, %v88
  %v107 = vpack.c.b16 %v91, %v89
  %124 = vmatpush.bf16.msra.mxu0 %v106
  %125 = vmatpush.bf16.msra.mxu0 %v104
  %126 = vmatpush.bf16.msra.mxu0 %v102
  %127 = vmatpush.bf16.msra.mxu0 %v100
  %128 = vmatpush.bf16.msra.mxu0 %v98
  %129 = vmatpush.bf16.msra.mxu0 %v96
  %130 = vmatpush.bf16.msra.mxu0 %v94
  %131 = vmatpush.bf16.msra.mxu0 %v92
  %132 = vmatmul.bf16.gmra.mxu0 %v42
  %v133 = vpop.f32.mrf.mxu0
  %v134 = vadd.f32 %v34, %v133
  %v135 = vpop.f32.mrf.mxu0
  %v136 = vadd.f32 %v34, %v135
  %137 = vdwg.mxu0
  %138 = vmatpush.bf16.msra.mxu0 %v107
  %139 = vmatpush.bf16.msra.mxu0 %v105
  %140 = vmatpush.bf16.msra.mxu0 %v103
  %141 = vmatpush.bf16.msra.mxu0 %v101
  %142 = vmatpush.bf16.msra.mxu0 %v99
  %143 = vmatpush.bf16.msra.mxu0 %v97
  %144 = vmatpush.bf16.msra.mxu0 %v95
  %145 = vmatpush.bf16.msra.mxu0 %v93
  %146 = vmatmul.bf16.gmra.mxu0 %v42
  %v147 = vpop.f32.mrf.mxu0
  %v148 = vadd.f32 %v35, %v147
  %v149 = vpop.f32.mrf.mxu0
  %v150 = vadd.f32 %v35, %v149
  %151 = vdwg.mxu0
  %v152 = vand.u32 2147483647, %v134
  %v153 = vand.u32 2147483647, %v148
  %v154 = vand.u32 2147483647, %v136
  %v155 = vand.u32 2147483647, %v150
  %v156 = vsub.f32 0.0, %v152
  %v157 = vsub.f32 0.0, %v153
  %v158 = vsub.f32 0.0, %v154
  %v159 = vsub.f32 0.0, %v155
  %v160 = vmul.f32 %v156, 1.442695
  %v161 = vpow.pop %v160
  %v162 = vmul.f32 %v157, 1.442695
  %v163 = vpow.pop %v162
  %v164 = vmul.f32 %v158, 1.442695
  %v165 = vpow.pop %v164
  %v166 = vmul.f32 %v159, 1.442695
  %v167 = vpow.pop %v166
  %v168 = vadd.f32 %v161, 1.0
  %v169 = vadd.f32 %v163, 1.0
  %v170 = vadd.f32 %v165, 1.0
  %v171 = vadd.f32 %v167, 1.0
  %v172 = vrcp.pop %v168
  %v173 = vrcp.pop %v169
  %v174 = vrcp.pop %v170
  %v175 = vrcp.pop %v171
  %vm176 = vcmp.ge.f32.partialorder %v134, 0.0
  %vm177 = vcmp.ge.f32.partialorder %v148, 0.0
  %vm178 = vcmp.ge.f32.partialorder %v136, 0.0
  %vm179 = vcmp.ge.f32.partialorder %v150, 0.0
  %v180 = vsub.f32 1.0, %v172
  %v181 = vsub.f32 1.0, %v173
  %v182 = vsub.f32 1.0, %v174
  %v183 = vsub.f32 1.0, %v175
  %v184 = vsel %vm176, %v172, %v180
  %v185 = vsel %vm177, %v173, %v181
  %v186 = vsel %vm178, %v174, %v182
  %v187 = vsel %vm179, %v175, %v183
  %v188 = vpack.c.bf16 %v185, %v184
  %v189 = vpack.c.bf16 %v187, %v186
  %190 = vst [vmem:[%s3] sm:$0xff] %v188
  %191 = vst [vmem:[%s3 + $0x8] sm:$0xff] %v189
  // Predicated region
  $region14: #{recvae_forward.3} parent=0 // pred_check
    _
  $region15: #{recvae_forward.3} parent=0 // pred_check_branch
    %193 = sbr.rel (0) target = $region17
  $region16: #{recvae_forward.3} parent=0 // pred_region
    _
  $region17: #{recvae_forward.3} parent=0 // pred_fallthru
    _
  // Predicated region
  $region18: #{recvae_forward.3} parent=0 // pred_check
    _
  $region19: #{recvae_forward.3} parent=0 // pred_check_branch
    %195 = sbr.rel (0) target = $region21
  $region20: #{recvae_forward.3} parent=0 // pred_region
    _
  $region21: #{recvae_forward.3} parent=0 // pred_fallthru
    _

// kernel: recvae_forward.2
$region0: #{recvae_forward.2}
  #allocation0 [shape = 'u32[]', space=smem, size = 0x4, offset = 0x4, fixed_abs, tag = 'smem constant byte address 0x4 - core index']
  #allocation1 [shape = 'u32[72,128]{1,0:T(1,128)}', space=vmem, size = 0x9000, scoped, tag = 'internal scratch']
  %s0 = inlined_call_operand.vmem [shape: f32[16,84], index: 0, kind: input, shape index: {}]
  %s1 = inlined_call_operand.vmem [shape: f32[16,64], index: 1, kind: input, shape index: {}]
  %s2 = inlined_call_operand.vmem [shape: f32[16,128], index: 2, kind: input, shape index: {}]
  %s3 = inlined_call_operand.vmem [shape: f32[84,128], index: 3, kind: input, shape index: {}]
  %s4 = inlined_call_operand.vmem [shape: f32[1,128], index: 4, kind: input, shape index: {}]
  %s5 = inlined_call_operand.vmem [shape: f32[128,128], index: 5, kind: input, shape index: {}]
  %s6 = inlined_call_operand.vmem [shape: f32[1,128], index: 6, kind: input, shape index: {}]
  %s7 = inlined_call_operand.vmem [shape: f32[128,128], index: 7, kind: input, shape index: {}]
  %s8 = inlined_call_operand.vmem [shape: f32[1,128], index: 8, kind: input, shape index: {}]
  %s9 = inlined_call_operand.vmem [shape: f32[64,128], index: 9, kind: input, shape index: {}]
  %s10 = inlined_call_operand.vmem [shape: f32[128,128], index: 10, kind: input, shape index: {}]
  %s11 = inlined_call_operand.vmem [shape: f32[1,128], index: 11, kind: input, shape index: {}]
  %s12 = inlined_call_operand.vmem [shape: bf16[16,128], index: 12, kind: output, shape index: {0}]
  %s13 = inlined_call_operand.vmem [shape: f32[16,128], index: 13, kind: output, shape index: {1}]
  %14 = xla_tuple %s12, %s13
  %s15 = sld [smem:[#allocation0]]
  $region66: #{recvae_forward.2} parent=0
    _
  %s17 = ssub.s32 1, %s15
  %s18 = scalar_select 0, %s17, %s15
  // Predicated region
  $region2: #{recvae_forward.2} parent=0 // pred_check
    _
  $region3: #{recvae_forward.2} parent=0 // pred_check_branch
    %20 = sbr.rel (0) target = $region5
  $region4: #{recvae_forward.2} parent=0 // pred_region
    _
  $region5: #{recvae_forward.2} parent=0 // pred_fallthru
    _
  // Predicated region
  $region6: #{recvae_forward.2} parent=0 // pred_check
    _
  $region7: #{recvae_forward.2} parent=0 // pred_check_branch
    %22 = sbr.rel (0) target = $region9
  $region8: #{recvae_forward.2} parent=0 // pred_region
    _
  $region9: #{recvae_forward.2} parent=0 // pred_fallthru
    _
  // Predicated region
  $region10: #{recvae_forward.2} parent=0 // pred_check
    _
  $region11: #{recvae_forward.2} parent=0 // pred_check_branch
    %24 = sbr.rel (0) target = $region13
  $region12: #{recvae_forward.2} parent=0 // pred_region
    _
  $region13: #{recvae_forward.2} parent=0 // pred_fallthru
    _
  // Predicated region
  $region14: #{recvae_forward.2} parent=0 // pred_check
    _
  $region15: #{recvae_forward.2} parent=0 // pred_check_branch
    %26 = sbr.rel (0) target = $region17
  $region16: #{recvae_forward.2} parent=0 // pred_region
    _
  $region17: #{recvae_forward.2} parent=0 // pred_fallthru
    _
  // Predicated region
  $region18: #{recvae_forward.2} parent=0 // pred_check
    _
  $region19: #{recvae_forward.2} parent=0 // pred_check_branch
    %28 = sbr.rel (0) target = $region21
  $region20: #{recvae_forward.2} parent=0 // pred_region
    _
  $region21: #{recvae_forward.2} parent=0 // pred_fallthru
    _
  // Predicated region
  $region22: #{recvae_forward.2} parent=0 // pred_check
    _
  $region23: #{recvae_forward.2} parent=0 // pred_check_branch
    %30 = sbr.rel (0) target = $region25
  $region24: #{recvae_forward.2} parent=0 // pred_region
    _
  $region25: #{recvae_forward.2} parent=0 // pred_fallthru
    _
  // Predicated region
  $region26: #{recvae_forward.2} parent=0 // pred_check
    _
  $region27: #{recvae_forward.2} parent=0 // pred_check_branch
    %32 = sbr.rel (0) target = $region29
  $region28: #{recvae_forward.2} parent=0 // pred_region
    _
  $region29: #{recvae_forward.2} parent=0 // pred_fallthru
    _
  // Predicated region
  $region30: #{recvae_forward.2} parent=0 // pred_check
    _
  $region31: #{recvae_forward.2} parent=0 // pred_check_branch
    %34 = sbr.rel (0) target = $region33
  $region32: #{recvae_forward.2} parent=0 // pred_region
    _
  $region33: #{recvae_forward.2} parent=0 // pred_fallthru
    _
  // Predicated region
  $region34: #{recvae_forward.2} parent=0 // pred_check
    _
  $region35: #{recvae_forward.2} parent=0 // pred_check_branch
    %36 = sbr.rel (0) target = $region37
  $region36: #{recvae_forward.2} parent=0 // pred_region
    _
  $region37: #{recvae_forward.2} parent=0 // pred_fallthru
    _
  // Predicated region
  $region38: #{recvae_forward.2} parent=0 // pred_check
    _
  $region39: #{recvae_forward.2} parent=0 // pred_check_branch
    %38 = sbr.rel (0) target = $region41
  $region40: #{recvae_forward.2} parent=0 // pred_region
    _
  $region41: #{recvae_forward.2} parent=0 // pred_fallthru
    _
  // Predicated region
  $region42: #{recvae_forward.2} parent=0 // pred_check
    _
  $region43: #{recvae_forward.2} parent=0 // pred_check_branch
    %40 = sbr.rel (0) target = $region45
  $region44: #{recvae_forward.2} parent=0 // pred_region
    _
  $region45: #{recvae_forward.2} parent=0 // pred_fallthru
    _
  // Predicated region
  $region46: #{recvae_forward.2} parent=0 // pred_check
    _
  $region47: #{recvae_forward.2} parent=0 // pred_check_branch
    %42 = sbr.rel (0) target = $region49
  $region48: #{recvae_forward.2} parent=0 // pred_region
    _
  $region49: #{recvae_forward.2} parent=0 // pred_fallthru
    _
  %v43 = vld [vmem:[%s0] sm:$0xff]
  %v44 = vld [vmem:[%s0 + $0x8] sm:$0xff]
  %v45 = vld [vmem:[%s3] sm:$0xff]
  %v46 = vld [vmem:[%s3 + $0x8] sm:$0xff]
  %v47 = vld [vmem:[%s3 + $0x10] sm:$0xff]
  %v48 = vld [vmem:[%s3 + $0x18] sm:$0xff]
  %v49 = vld [vmem:[%s3 + $0x20] sm:$0xff]
  %v50 = vld [vmem:[%s3 + $0x28] sm:$0xff]
  %v51 = vld [vmem:[%s3 + $0x30] sm:$0xff]
  %v52 = vld [vmem:[%s3 + $0x38] sm:$0xff]
  %v53 = vld [vmem:[%s3 + $0x40] sm:$0xff]
  %v54 = vld [vmem:[%s3 + $0x48] sm:$0xff]
  %v55 = vld [vmem:[%s3 + $0x50] sm:$0xf]
  %v56 = vld [vmem:[%s4] sm:$0x1]
  %v58 = vperm.slane %v56, 0
  %vm60 = vcmask 687104
  %v62 = vsel %vm60, %v43, 0
  %v65 = vsel %vm60, %v44, 0
  %vm67 = vcmask 1043456
  %v69 = vsel %vm67, %v55, 0
  %71 = vmatpush.msra.mxu0 0.0
  %72 = vmatpush.msra.mxu0 0.0
  %73 = vmatpush.msra.mxu0 0.0
  %74 = vmatpush.msra.mxu0 0.0
  %75 = vmatpush.msra.mxu0 0.0
  %76 = vmatpush.msra.mxu0 %v69
  %77 = vmatpush.msra.mxu0 %v54
  %78 = vmatpush.msra.mxu0 %v53
  %79 = vmatpush.msra.mxu0 %v52
  %80 = vmatpush.msra.mxu0 %v51
  %81 = vmatpush.msra.mxu0 %v50
  %82 = vmatpush.msra.mxu0 %v49
  %83 = vmatpush.msra.mxu0 %v48
  %84 = vmatpush.msra.mxu0 %v47
  %85 = vmatpush.msra.mxu0 %v46
  %86 = vmatpush.msra.mxu0 %v45
  %87 = vmatmul.f32.gmra.mxu0 %v62
  %v88 = vpop.f32.mrf.mxu0
  %v89 = vadd.f32 %v58, %v88
  %90 = vmatmul.f32.gmra.mxu0 %v65
  %v91 = vpop.f32.mrf.mxu0
  %v92 = vadd.f32 %v58, %v91
  %93 = vdwg.mxu0
  %v94 = vmax.f32 %v89, 0.0
  %v95 = vmax.f32 %v92, 0.0
  %v96 = vld [vmem:[%s5] sm:$0xff]
  %v97 = vld [vmem:[%s5 + $0x8] sm:$0xff]
  %v98 = vld [vmem:[%s5 + $0x10] sm:$0xff]
  %v99 = vld [vmem:[%s5 + $0x18] sm:$0xff]
  %v100 = vld [vmem:[%s5 + $0x20] sm:$0xff]
  %v101 = vld [vmem:[%s5 + $0x28] sm:$0xff]
  %v102 = vld [vmem:[%s5 + $0x30] sm:$0xff]
  %v103 = vld [vmem:[%s5 + $0x38] sm:$0xff]
  %v104 = vld [vmem:[%s5 + $0x40] sm:$0xff]
  %v105 = vld [vmem:[%s5 + $0x48] sm:$0xff]
  %v106 = vld [vmem:[%s5 + $0x50] sm:$0xff]
  %v107 = vld [vmem:[%s5 + $0x58] sm:$0xff]
  %v108 = vld [vmem:[%s5 + $0x60] sm:$0xff]
  %v109 = vld [vmem:[%s5 + $0x68] sm:$0xff]
  %v110 = vld [vmem:[%s5 + $0x70] sm:$0xff]
  %v111 = vld [vmem:[%s5 + $0x78] sm:$0xff]
  %v112 = vld [vmem:[%s6] sm:$0x1]
  %v114 = vperm.slane %v112, 0
  %116 = vmatpush.msra.mxu0 %v111
  %117 = vmatpush.msra.mxu0 %v110
  %118 = vmatpush.msra.mxu0 %v109
  %119 = vmatpush.msra.mxu0 %v108
  %120 = vmatpush.msra.mxu0 %v107
  %121 = vmatpush.msra.mxu0 %v106
  %122 = vmatpush.msra.mxu0 %v105
  %123 = vmatpush.msra.mxu0 %v104
  %124 = vmatpush.msra.mxu0 %v103
  %125 = vmatpush.msra.mxu0 %v102
  %126 = vmatpush.msra.mxu0 %v101
  %127 = vmatpush.msra.mxu0 %v100
  %128 = vmatpush.msra.mxu0 %v99
  %129 = vmatpush.msra.mxu0 %v98
  %130 = vmatpush.msra.mxu0 %v97
  %131 = vmatpush.msra.mxu0 %v96
  %132 = vmatmul.f32.gmra.mxu0 %v94
  %v133 = vpop.f32.mrf.mxu0
  %v134 = vadd.f32 %v114, %v133
  %135 = vmatmul.f32.gmra.mxu0 %v95
  %v136 = vpop.f32.mrf.mxu0
  %v137 = vadd.f32 %v114, %v136
  %138 = vdwg.mxu0
  %v139 = vmax.f32 %v134, 0.0
  %v140 = vmax.f32 %v137, 0.0
  %v141 = vld [vmem:[%s7] sm:$0xff]
  %v142 = vld [vmem:[%s7 + $0x8] sm:$0xff]
  %v143 = vld [vmem:[%s7 + $0x10] sm:$0xff]
  %v144 = vld [vmem:[%s7 + $0x18] sm:$0xff]
  %v145 = vld [vmem:[%s7 + $0x20] sm:$0xff]
  %v146 = vld [vmem:[%s7 + $0x28] sm:$0xff]
  %v147 = vld [vmem:[%s7 + $0x30] sm:$0xff]
  %v148 = vld [vmem:[%s7 + $0x38] sm:$0xff]
  %v149 = vld [vmem:[%s7 + $0x40] sm:$0xff]
  %v150 = vld [vmem:[%s7 + $0x48] sm:$0xff]
  %v151 = vld [vmem:[%s7 + $0x50] sm:$0xff]
  %v152 = vld [vmem:[%s7 + $0x58] sm:$0xff]
  %v153 = vld [vmem:[%s7 + $0x60] sm:$0xff]
  %v154 = vld [vmem:[%s7 + $0x68] sm:$0xff]
  %v155 = vld [vmem:[%s7 + $0x70] sm:$0xff]
  %v156 = vld [vmem:[%s7 + $0x78] sm:$0xff]
  %v157 = vld [vmem:[%s8] sm:$0x1]
  %v159 = vperm.slane %v157, 0
  %161 = vmatpush.msra.mxu0 %v156
  %162 = vmatpush.msra.mxu0 %v155
  %163 = vmatpush.msra.mxu0 %v154
  %164 = vmatpush.msra.mxu0 %v153
  %165 = vmatpush.msra.mxu0 %v152
  %166 = vmatpush.msra.mxu0 %v151
  %167 = vmatpush.msra.mxu0 %v150
  %168 = vmatpush.msra.mxu0 %v149
  %169 = vmatpush.msra.mxu0 %v148
  %170 = vmatpush.msra.mxu0 %v147
  %171 = vmatpush.msra.mxu0 %v146
  %172 = vmatpush.msra.mxu0 %v145
  %173 = vmatpush.msra.mxu0 %v144
  %174 = vmatpush.msra.mxu0 %v143
  %175 = vmatpush.msra.mxu0 %v142
  %176 = vmatpush.msra.mxu0 %v141
  %177 = vmatmul.f32.gmra.mxu0 %v139
  %v178 = vpop.f32.mrf.mxu0
  %v179 = vadd.f32 %v159, %v178
  %180 = vmatmul.f32.gmra.mxu0 %v140
  %v181 = vpop.f32.mrf.mxu0
  %v182 = vadd.f32 %v159, %v181
  %183 = vdwg.mxu0
  %184 = vst [vmem:[%s13] sm:$0xff] %v179
  %185 = vst [vmem:[%s13 + $0x8] sm:$0xff] %v182
  %v186 = vld [vmem:[%s1] sm:$0xff]
  %v187 = vld [vmem:[%s1 + $0x8] sm:$0xff]
  %v188 = vmul.f32 %v179, 0.5
  %v189 = vmul.f32 %v182, 0.5
  %v190 = vmul.f32 %v188, 1.442695
  %v191 = vpow.pop %v190
  %v192 = vmul.f32 %v189, 1.442695
  %v193 = vpow.pop %v192
  %196 = vrot.lane.b32.xlu0 %v191, 64
  %v197 = vpop.permute.xlu0 %196
  %198 = vrot.lane.b32.xlu0 %v193, 64
  %v199 = vpop.permute.xlu0 %198
  %v202 = vmul.f32 %v186, %v197
  %v203 = vmul.f32 %v187, %v199
  %v204 = vadd.f32 %v179, %v202
  %v205 = vadd.f32 %v182, %v203
  %v206 = vld [vmem:[%s9] sm:$0xff]
  %v207 = vld [vmem:[%s9 + $0x8] sm:$0xff]
  %v208 = vld [vmem:[%s9 + $0x10] sm:$0xff]
  %v209 = vld [vmem:[%s9 + $0x18] sm:$0xff]
  %v210 = vld [vmem:[%s9 + $0x20] sm:$0xff]
  %v211 = vld [vmem:[%s9 + $0x28] sm:$0xff]
  %v212 = vld [vmem:[%s9 + $0x30] sm:$0xff]
  %v213 = vld [vmem:[%s9 + $0x38] sm:$0xff]
  %v214 = vld [vmem:[%s2] sm:$0xff]
  %v215 = vld [vmem:[%s2 + $0x8] sm:$0xff]
  %vm216 = vcmask 523264
  %v218 = vsel %vm216, %v204, 0
  %v221 = vsel %vm216, %v205, 0
  %223 = vmatpush.msra.mxu0 0.0
  %224 = vmatpush.msra.mxu0 0.0
  %225 = vmatpush.msra.mxu0 0.0
  %226 = vmatpush.msra.mxu0 0.0
  %227 = vmatpush.msra.mxu0 0.0
  %228 = vmatpush.msra.mxu0 0.0
  %229 = vmatpush.msra.mxu0 0.0
  %230 = vmatpush.msra.mxu0 0.0
  %231 = vmatpush.msra.mxu0 %v213
  %232 = vmatpush.msra.mxu0 %v212
  %233 = vmatpush.msra.mxu0 %v211
  %234 = vmatpush.msra.mxu0 %v210
  %235 = vmatpush.msra.mxu0 %v209
  %236 = vmatpush.msra.mxu0 %v208
  %237 = vmatpush.msra.mxu0 %v207
  %238 = vmatpush.msra.mxu0 %v206
  %239 = vmatmul.f32.gmra.mxu0 %v218
  %v240 = vpop.f32.mrf.mxu0
  %v241 = vadd.f32 %v214, %v240
  %242 = vmatmul.f32.gmra.mxu0 %v221
  %v243 = vpop.f32.mrf.mxu0
  %v244 = vadd.f32 %v215, %v243
  %245 = vdwg.mxu0
  %v246 = vmax.f32 %v241, 0.0
  %v247 = vmax.f32 %v244, 0.0
  %v248 = vld [vmem:[%s10] sm:$0xff]
  %v249 = vld [vmem:[%s10 + $0x8] sm:$0xff]
  %v250 = vld [vmem:[%s10 + $0x10] sm:$0xff]
  %v251 = vld [vmem:[%s10 + $0x18] sm:$0xff]
  %v252 = vld [vmem:[%s10 + $0x20] sm:$0xff]
  %v253 = vld [vmem:[%s10 + $0x28] sm:$0xff]
  %v254 = vld [vmem:[%s10 + $0x30] sm:$0xff]
  %v255 = vld [vmem:[%s10 + $0x38] sm:$0xff]
  %v256 = vld [vmem:[%s10 + $0x40] sm:$0xff]
  %v257 = vld [vmem:[%s10 + $0x48] sm:$0xff]
  %v258 = vld [vmem:[%s10 + $0x50] sm:$0xff]
  %v259 = vld [vmem:[%s10 + $0x58] sm:$0xff]
  %v260 = vld [vmem:[%s10 + $0x60] sm:$0xff]
  %v261 = vld [vmem:[%s10 + $0x68] sm:$0xff]
  %v262 = vld [vmem:[%s10 + $0x70] sm:$0xff]
  %v263 = vld [vmem:[%s10 + $0x78] sm:$0xff]
  %v264 = vld [vmem:[%s11] sm:$0x1]
  %v266 = vperm.slane %v264, 0
  %268 = vmatpush.msra.mxu0 %v263
  %269 = vmatpush.msra.mxu0 %v262
  %270 = vmatpush.msra.mxu0 %v261
  %271 = vmatpush.msra.mxu0 %v260
  %272 = vmatpush.msra.mxu0 %v259
  %273 = vmatpush.msra.mxu0 %v258
  %274 = vmatpush.msra.mxu0 %v257
  %275 = vmatpush.msra.mxu0 %v256
  %276 = vmatpush.msra.mxu0 %v255
  %277 = vmatpush.msra.mxu0 %v254
  %278 = vmatpush.msra.mxu0 %v253
  %279 = vmatpush.msra.mxu0 %v252
  %280 = vmatpush.msra.mxu0 %v251
  %281 = vmatpush.msra.mxu0 %v250
  %282 = vmatpush.msra.mxu0 %v249
  %283 = vmatpush.msra.mxu0 %v248
  %284 = vmatmul.f32.gmra.mxu0 %v246
  %v285 = vpop.f32.mrf.mxu0
  %v286 = vadd.f32 %v266, %v285
  %287 = vmatmul.f32.gmra.mxu0 %v247
  %v288 = vpop.f32.mrf.mxu0
  %v289 = vadd.f32 %v266, %v288
  %290 = vdwg.mxu0
  %v291 = vmax.f32 %v286, 0.0
  %v292 = vmax.f32 %v289, 0.0
  %v293 = vpack.c.bf16 %v291, %v291
  %v294 = vpack.c.bf16 %v292, %v292
  %295 = vst [vmem:[%s12] sm:$0xf] %v293
  %296 = vst [vmem:[%s12 + $0x4] sm:$0xf] %v294
  // Predicated region
  $region50: #{recvae_forward.2} parent=0 // pred_check
    _
  $region51: #{recvae_forward.2} parent=0 // pred_check_branch
    %298 = sbr.rel (0) target = $region53
  $region52: #{recvae_forward.2} parent=0 // pred_region
    _
  $region53: #{recvae_forward.2} parent=0 // pred_fallthru
    _
  // Predicated region
  $region54: #{recvae_forward.2} parent=0 // pred_check
    _
  $region55: #{recvae_forward.2} parent=0 // pred_check_branch
    %300 = sbr.rel (0) target = $region57
  $region56: #{recvae_forward.2} parent=0 // pred_region
    _
  $region57: #{recvae_forward.2} parent=0 // pred_fallthru
    _
  // Predicated region
  $region58: #{recvae_forward.2} parent=0 // pred_check
    _
  $region59: #{recvae_forward.2} parent=0 // pred_check_branch
    %302 = sbr.rel (0) target = $region61
  $region60: #{recvae_forward.2} parent=0 // pred_region
    _
  $region61: #{recvae_forward.2} parent=0 // pred_fallthru
    _
  // Predicated region
  $region62: #{recvae_forward.2} parent=0 // pred_check
    _
  $region63: #{recvae_forward.2} parent=0 // pred_check_branch
    %304 = sbr.rel (0) target = $region65
  $region64: #{recvae_forward.2} parent=0 // pred_region
    _
  $region65: #{recvae_forward.2} parent=0 // pred_fallthru
    _

</llo_original>
